<compile_context>
chip_gen: v7x
topology: tpu7x:2x2x1
jax: 0.10.0
libtpu: 0.0.40
codegen_flags: <defaults>
</compile_context>

<pallas_src>
import functools

import jax
import jax.numpy as jnp
from jax.experimental import pallas as pl
from jax.experimental.pallas import tpu as pltpu


def _drop_path_kernel(keep_ref, x_ref, o_ref, *, inv_keep_prob):
    # keep_ref: (B,) int32 in SMEM (scalar prefetch). One scalar read per tile.
    b = pl.program_id(0)
    scale = jnp.where(
        keep_ref[b] != 0,
        jnp.asarray(inv_keep_prob, dtype=jnp.float32),
        jnp.float32(0.0),
    )
    # Scale in f32 for accuracy of 1/keep_prob, then cast back to the I/O dtype.
    o_ref[...] = (x_ref[...].astype(jnp.float32) * scale).astype(o_ref.dtype)


def _choose_row_tile(n_rows, n_cols, itemsize, vmem_budget=4 * 1024 * 1024):
    """Largest row tile whose (tm, C) block fits a comfortable VMEM budget."""
    if n_rows * n_cols * itemsize <= vmem_budget:
        return n_rows  # whole-sample block (fewest grid steps)
    best = None
    for tm in range(8, n_rows + 1, 8):
        if n_rows % tm == 0 and tm * n_cols * itemsize <= vmem_budget:
            best = tm
    return best if best is not None else n_rows


def drop_path_pallas(x, drop_prob=0.0, *, training=False, key=None, seed=0, tm=None):
    """DropPath / stochastic depth.

    x: (B, ...) — any rank >= 2; the mask is per leading (batch) index.
    Identity when drop_prob == 0.0 or not training (same as the PyTorch module).
    """
    if drop_prob == 0.0 or not training:
        return x  # exact PyTorch behaviour: the module is a no-op here

    keep_prob = 1.0 - float(drop_prob)
    B = x.shape[0]
    C = x.shape[-1]
    # Flatten everything between batch and the last (lane) dim into "rows" so
    # the kernel always sees a lane-dense (1, rows, C) slab per sample.
    x3 = x.reshape(B, -1, C)
    N = x3.shape[1]

    # Per-sample Bernoulli(keep_prob) keep decision, same distribution as
    # torch: keep_b = floor(keep_prob + U[0,1)).  This is a tiny (B,) draw, so
    # it is done with jax.random in the wrapper (the TPU hardware PRNG
    # primitives have no interpret/CPU lowering).
    # TODO(synk): torch.rand's exact bit stream cannot be reproduced; only the
    # per-sample Bernoulli(keep_prob) distribution matches.
    if key is None:
        key = jax.random.PRNGKey(seed)
    keep = (jax.random.uniform(key, (B,), dtype=jnp.float32) < keep_prob).astype(
        jnp.int32
    )

    if tm is None:
        tm = _choose_row_tile(N, C, x3.dtype.itemsize)
    # Respect the (8,128) tiling rule: partial row tiles need tm % 8 == 0 and a
    # lane-dense C; otherwise fall back to whole-sample blocks (always legal).
    if tm != N and (tm % 8 != 0 or N % tm != 0 or C % 128 != 0):
        tm = N

    kernel = functools.partial(_drop_path_kernel, inv_keep_prob=1.0 / keep_prob)

    out3 = pl.pallas_call(
        kernel,
        out_shape=jax.ShapeDtypeStruct(x3.shape, x3.dtype),
        grid_spec=pltpu.PrefetchScalarGridSpec(
            num_scalar_prefetch=1,  # keep mask lives in SMEM
            grid=(B, N // tm),
            in_specs=[
                pl.BlockSpec((1, tm, C), lambda b, r, keep: (b, r, 0)),
            ],
            out_specs=pl.BlockSpec((1, tm, C), lambda b, r, keep: (b, r, 0)),
        ),
        compiler_params=pltpu.CompilerParams(
            # Fully independent work -> shard across both TCs on v7x.
            dimension_semantics=("parallel", "parallel"),
        ),
    )(keep, x3)

    return out3.reshape(x.shape)


if __name__ == "__main__":
    # Small ViT-style residual-branch tensor: (batch, tokens, channels).
    # Channels = 128 keeps the last dim lane-dense (multiple of 128).
    B, N, C = 4, 16, 128
    drop_prob = 0.3
    keep_prob = 1.0 - drop_prob

    key = jax.random.PRNGKey(0)
    x = jax.random.normal(key, (B, N, C), dtype=jnp.float32)

    # Eval mode / p == 0: identity, exactly like the PyTorch module.
    assert jnp.array_equal(drop_path_pallas(x, drop_prob, training=False), x)
    assert jnp.array_equal(drop_path_pallas(x, 0.0, training=True), x)

    # Training mode: per-sample Bernoulli keep + 1/keep_prob rescale.
    out = drop_path_pallas(x, drop_prob, training=True, seed=0)
    out = jax.block_until_ready(out)
    assert out.shape == x.shape

    # Every sample must be either exactly dropped (all zeros) or x * 1/keep_prob.
    inv_keep = jnp.float32(1.0 / keep_prob)
    kept = []
    for b in range(B):
        sample = out[b]
        if float(jnp.max(jnp.abs(sample))) == 0.0:
            kept.append(0.0)
        else:
            assert jnp.allclose(sample, x[b] * inv_keep, rtol=1e-6, atol=1e-6), (
                f"sample {b} is not scaled by 1/keep_prob"
            )
            kept.append(1.0)

    # Rebuild the reference with the realized mask and compare end to end.
    mask = jnp.array(kept, dtype=x.dtype).reshape(B, 1, 1)
    ref = x * inv_keep * mask
    assert jnp.allclose(out, ref, rtol=1e-6, atol=1e-6), "mismatch vs reference"

    # The realized mask must match the wrapper's draw (same key / distribution).
    expected_keep = (
        jax.random.uniform(jax.random.PRNGKey(0), (B,), dtype=jnp.float32) < keep_prob
    ).astype(x.dtype)
    assert jnp.array_equal(jnp.array(kept, dtype=x.dtype), expected_keep)

    print("KERNEL_OK")
</pallas_src>

<mosaic_0001>
module attributes {stable_mosaic.version = 11 : i64} {
  func.func @_drop_path_kernel(%arg0: i32, %arg1: i32, %arg2: memref<4xi32, #tpu.memory_space<smem>>, %arg3: memref<1x16x128xf32, #tpu.memory_space<vmem>>, %arg4: memref<1x16x128xf32, #tpu.memory_space<vmem>>) attributes {dimension_semantics = [#tpu.dimension_semantics<parallel>, #tpu.dimension_semantics<parallel>], iteration_bounds = array<i64: 4, 1>, scalar_prefetch = 1 : i64, scratch_operands = 0 : i64, tpu.core_type = #tpu.core_type<tc>, window_params = [{transform_indices = @transform_0, window_bounds = array<i64: 1, 16, 128>}, {transform_indices = @transform_1, window_bounds = array<i64: 1, 16, 128>}]} {
    %0 = arith.index_cast %arg0 : i32 to index
    %1 = memref.load %arg2[%0] : memref<4xi32, #tpu.memory_space<smem>>
    %c0_i32 = arith.constant 0 : i32
    %2 = arith.cmpi ne, %1, %c0_i32 : i32
    %cst = arith.constant 1.42857146 : f32
    %cst_0 = arith.constant 0.000000e+00 : f32
    %3 = arith.select %2, %cst, %cst_0 : f32
    %c0 = arith.constant 0 : index
    %c0_1 = arith.constant 0 : index
    %c0_2 = arith.constant 0 : index
    %4 = vector.load %arg3[%c0, %c0_1, %c0_2] : memref<1x16x128xf32, #tpu.memory_space<vmem>>, vector<1x16x128xf32>
    %5 = vector.broadcast %3 : f32 to vector<1x16x128xf32>
    %6 = arith.mulf %4, %5 : vector<1x16x128xf32>
    %c0_3 = arith.constant 0 : index
    %c0_4 = arith.constant 0 : index
    %c0_5 = arith.constant 0 : index
    %7 = vector.load %arg4[%c0_3, %c0_4, %c0_5] : memref<1x16x128xf32, #tpu.memory_space<vmem>>, vector<1x16x128xf32>
    tpu.vector_store %arg4[%c0_3, %c0_4, %c0_5], %6 {strides = array<i32>} : memref<1x16x128xf32, #tpu.memory_space<vmem>>, vector<1x16x128xf32>,
    return
  }
  func.func @transform_0(%arg0: i32, %arg1: i32, %arg2: memref<4xi32, #tpu.memory_space<smem>>) -> (i32, i32, i32) {
    %c0_i32 = arith.constant 0 : i32
    %c0_i32_0 = arith.constant 0 : i32
    return %arg0, %arg1, %c0_i32 : i32, i32, i32
  }
  func.func @transform_1(%arg0: i32, %arg1: i32, %arg2: memref<4xi32, #tpu.memory_space<smem>>) -> (i32, i32, i32) {
    %c0_i32 = arith.constant 0 : i32
    %c0_i32_0 = arith.constant 0 : i32
    return %arg0, %arg1, %c0_i32 : i32, i32, i32
  }
}

</mosaic_0001>

<llo_original>
// kernel: tpu_custom_call.1
$region0: #{tpu_custom_call.1}
  #allocation0 [shape = 'u32[]', space=smem, size = 0x4, offset = 0x4, fixed_abs, tag = 'smem constant byte address 0x4 - core index']
  #allocation1 [shape = 'u32[144,128]{1,0:T(1,128)}', space=vmem, size = 0x12000, scoped, tag = 'internal scratch']
  #allocation2 [shape = 's32[1]{0}', space=sflag, size = 0x4, scoped, tag = 'scoped memory for tpu_custom_call.1']
  #allocation3 [shape = 'u8[512]{0}', space=smem, size = 0x200, scoped, tag = 'prefetched SMEM operand 0']
  %s0 = inlined_call_operand.hbm [shape: s32[4], index: 0, kind: input, shape index: {}]
  %s1 = inlined_call_operand.hbm [shape: f32[4,16,128], index: 1, kind: input, shape index: {}]
  %s2 = inlined_call_operand.hbm [shape: f32[4,16,128], index: 2, kind: output, shape index: {}]
  %s3 = sld [smem:[#allocation0]]
  $region41: #{tpu_custom_call.1} parent=0
    _
  %s5 = ssub.s32 1, %s3
  %s6 = scalar_select 0, %s5, %s3
  %8 = dma.hbm_to_smem %s0, 16, [#allocation3], [#allocation2]
  %9 = dma.done [#allocation2], 16
  %10 = sfence
  $region1: #{tpu_custom_call.1} parent=0
    #allocation4 [shape = 'u8[16384]{0}', space=vmem, size = 0x4000, scoped, tag = 'input window, operand 1']
    #allocation5 [shape = 's32[2]{0}', space=sflag, size = 0x8, scoped, tag = 'scoped memory for tpu_custom_call.1']
    #allocation6 [shape = 's32[2]{0}', space=sflag, size = 0x8, scoped, tag = 'scoped memory for tpu_custom_call.1']
    #allocation7 [shape = 'u8[16384]{0}', space=vmem, size = 0x4000, scoped, tag = 'output window, operand 0']
    %11 = vsyncpa [#allocation5], 0
    %s12 = scalar_lea.sflag [#allocation5], 1
    %13 = vsyncpa %s12, 0
    %14 = vsyncpa [#allocation6], 0
    %s15 = scalar_lea.sflag [#allocation6], 1
    %16 = vsyncpa %s15, 0
    loop: start=0, step=1, limit=6
    $region2: #{tpu_custom_call.1} parent=1 // loop_pre_header
      _
    $region3: #{tpu_custom_call.1} parent=1 // loop_header
      %s18 = sphi 0, %s22
      %p19 = scmp.ge.s32.totalorder %s18, 6
      %s25 = sphi 0, %s37
      %s26 = sphi 0, %s33
      %s27 = sphi 0, %s25
      %s28 = sphi 0, %s26
      %s29 = sphi 0, %s27
      %s30 = sphi 0, %s28
      %s42 = sphi 0, %s44
      %s45 = sphi 0, %s42
      %s46 = sphi 0, %s45
      %s62 = sphi 0, %s46
      %s70 = sphi 0, %s72
      %s73 = sphi 0, %s70
      %s74 = sphi 0, %s73
      %s90 = sphi 0, %s74
    $region4: #{tpu_custom_call.1} parent=1 // loop_header_branch
      %21 = sbr.rel (%p19) target = $region8
    $region5: #{tpu_custom_call.1} parent=1 // loop_body
      %s23 = ssub.s32 %s18, 1
      %s24 = ssub.s32 %s18, 2
      %s31 = sadd.s32 1, %s26
      %p32 = scmp.ge.s32.totalorder %s31, 1
      %s33 = scalar_select %p32, 0, %s31
      %s34 = sadd.s32 1, %s25
      %s35 = scalar_select %p32, %s34, %s25
      %p36 = scmp.ge.s32.totalorder %s35, 4
      %s37 = scalar_select %p36, 0, %s35
      %s38 = ssub.s32 %s25, %s37
      %s39 = ssub.s32 %s26, %s33
      %s40 = sor.u32 %s38, %s39
      %p41 = scmp.eq.s32.totalorder %s40, 0
      %s43 = sadd.s32 %s42, 1
      %s44 = scalar_select %p41, %s42, %s43
      %p47 = pneg %p41
      %p48 = scmp.eq.s32.totalorder %s18, 3
      %p49 = por %p47, %p48
      %p50 = scmp.ne.s32.totalorder %s42, %s45
      %p51 = scmp.eq.s32.totalorder %s18, 0
      %p52 = por %p50, %p51
      %p53 = scmp.ne.s32.totalorder %s42, %s45
      %p54 = scmp.eq.s32.totalorder %s23, 3
      %p55 = por %p53, %p54
      %p56 = scmp.ne.s32.totalorder %s45, %s46
      %p57 = scmp.eq.s32.totalorder %s23, 0
      %p58 = por %p56, %p57
      %p59 = scmp.ne.s32.totalorder %s45, %s46
      %p60 = scmp.eq.s32.totalorder %s24, 3
      %p61 = por %p59, %p60
      %p63 = scmp.ne.s32.totalorder %s46, %s62
      %p64 = scmp.eq.s32.totalorder %s24, 0
      %p65 = por %p63, %p64
      %s66 = ssub.s32 %s25, %s37
      %s67 = ssub.s32 %s26, %s33
      %s68 = sor.u32 %s66, %s67
      %p69 = scmp.eq.s32.totalorder %s68, 0
      %s71 = sadd.s32 %s70, 1
      %s72 = scalar_select %p69, %s70, %s71
      %p75 = pneg %p69
      %p76 = scmp.eq.s32.totalorder %s18, 3
      %p77 = por %p75, %p76
      %p78 = scmp.ne.s32.totalorder %s70, %s73
      %p79 = scmp.eq.s32.totalorder %s18, 0
      %p80 = por %p78, %p79
      %p81 = scmp.ne.s32.totalorder %s70, %s73
      %p82 = scmp.eq.s32.totalorder %s23, 3
      %p83 = por %p81, %p82
      %p84 = scmp.ne.s32.totalorder %s73, %s74
      %p85 = scmp.eq.s32.totalorder %s23, 0
      %p86 = por %p84, %p85
      %p87 = scmp.ne.s32.totalorder %s73, %s74
      %p88 = scmp.eq.s32.totalorder %s24, 3
      %p89 = por %p87, %p88
      %p91 = scmp.ne.s32.totalorder %s74, %s90
      %p92 = scmp.eq.s32.totalorder %s24, 0
      %p93 = por %p91, %p92
      %p94 = scmp.le.s32.totalorder 1, %s18
      %p95 = scmp.lt.s32.totalorder %s18, 5
      %p96 = pnand %p94, %p95
      %p97 = pneg %p96
      // Predicated region
      $region9: #{tpu_custom_call.1} parent=5 // pred_check
        _
      $region10: #{tpu_custom_call.1} parent=5 // pred_check_branch
        %99 = sbr.rel (%p96) target = $region12
      $region11: #{tpu_custom_call.1} parent=5 // pred_region
        %s100 = ssub.s32 %s18, 1
      $region12: #{tpu_custom_call.1} parent=5 // pred_fallthru
        _
      %p101 = scmp.lt.s32.totalorder %s18, 4
      // Predicated region
      $region13: #{tpu_custom_call.1} parent=5 // pred_check
        %p102 = pneg %p101
      $region14: #{tpu_custom_call.1} parent=5 // pred_check_branch
        %104 = sbr.rel (%p102) target = $region16
      $region15: #{tpu_custom_call.1} parent=5 // pred_region
        // Predicated region
        $region17: #{tpu_custom_call.1} parent=15 // pred_check
          %p105 = pneg %p52
        $region18: #{tpu_custom_call.1} parent=15 // pred_check_branch
          %107 = sbr.rel (%p105) target = $region20
        $region19: #{tpu_custom_call.1} parent=15 // pred_region
          %s108 = sand.u32 %s42, 1
          %s109 = scalar_lea.sflag [#allocation5], %s108
          %s110 = sand.u32 %s42, 1
          %s111 = smul.addr %s110, 16
          %s112 = scalar_lea.vmem [#allocation4], %s111
          %s113 = smul.u32 2, %s26
          %s115 = ssub.s32 256, 256
          %116 = vsyncadd %s109, %s115
          %s117 = smul.addr %s25, 2
          %s118 = sadd.s32 %s113, %s117
          %s119 = smul.addr %s118, 128
          %s120 = scalar_lea.hbm %s1, %s119
          %s121 = sshll.u32 %s112, 4
          %s122 = int_to_ptr.vmem [resolvable:$true] %s121
          %127 = dma.hbm_to_vmem [thread:$0]  %s120, 256, %s122, %s109, 128, 128, 8
        $region20: #{tpu_custom_call.1} parent=15 // pred_fallthru
          _
      $region16: #{tpu_custom_call.1} parent=5 // pred_fallthru
        _
      %p128 = scmp.le.s32.totalorder 1, %s18
      %p129 = scmp.lt.s32.totalorder %s18, 5
      %p130 = pnand %p128, %p129
      %p131 = pneg %p130
      // Predicated region
      $region21: #{tpu_custom_call.1} parent=5 // pred_check
        _
      $region22: #{tpu_custom_call.1} parent=5 // pred_check_branch
        %133 = sbr.rel (%p130) target = $region24
      $region23: #{tpu_custom_call.1} parent=5 // pred_region
        %s134 = ssub.s32 %s18, 1
        %s135 = sand.u32 %s45, 1
        %s136 = scalar_lea.sflag [#allocation5], %s135
        %s137 = sand.u32 %s45, 1
        %s138 = smul.addr %s137, 16
        %s139 = scalar_lea.vmem [#allocation4], %s138
        // Predicated region
        $region25: #{tpu_custom_call.1} parent=23 // pred_check
          %p140 = pneg %p58
        $region26: #{tpu_custom_call.1} parent=23 // pred_check_branch
          %142 = sbr.rel (%p140) target = $region28
        $region27: #{tpu_custom_call.1} parent=23 // pred_region
          %143 = dma.done %s136, 256
        $region28: #{tpu_custom_call.1} parent=23 // pred_fallthru
          _
        %s144 = sand.u32 %s45, 1
        %s145 = scalar_lea.sflag [#allocation5], %s144
        %s146 = sand.u32 %s45, 1
        %s147 = smul.addr %s146, 16
        %s148 = scalar_lea.vmem [#allocation4], %s147
        %p149 = pneg %p58
        %p150 = pneg %p55
        %p151 = pneg %p86
        %p152 = pneg %p83
        %s153 = sand.u32 %s73, 1
        %s154 = scalar_lea.sflag [#allocation6], %s153
        %s155 = sand.u32 %s73, 1
        %s156 = smul.addr %s155, 16
        %s157 = scalar_lea.vmem [#allocation7], %s156
        %s158 = smul.u32 2, %s28
        %s159 = smul.u32 2, %s28
        %s160 = sld [smem:[#allocation3 + %s27]]
        %p161 = scmp.ne.s32.totalorder %s160, 0
        %s162 = scalar_select %p161, 1.4285715, 0.0
        %v163 = vld [vmem:[%s139] sm:$0xff]
        %v164 = vld [vmem:[%s139 + $0x8] sm:$0xff]
        %v165 = vstv %s162
        %v166 = vmul.f32 %v163, %v165
        %v167 = vmul.f32 %v164, %v165
        %168 = vst [vmem:[%s157] sm:$0xff] %v166
        %169 = vst [vmem:[%s157 + $0x8] sm:$0xff] %v167
        %s170 = sand.u32 %s73, 1
        %s171 = scalar_lea.sflag [#allocation6], %s170
        %s172 = sand.u32 %s73, 1
        %s173 = smul.addr %s172, 16
        %s174 = scalar_lea.vmem [#allocation7], %s173
        // Predicated region
        $region29: #{tpu_custom_call.1} parent=23 // pred_check
          %p175 = pneg %p83
        $region30: #{tpu_custom_call.1} parent=23 // pred_check_branch
          %177 = sbr.rel (%p175) target = $region32
        $region31: #{tpu_custom_call.1} parent=23 // pred_region
          %s178 = smul.u32 2, %s28
          %s180 = ssub.s32 256, 256
          %181 = vsyncadd %s171, %s180
          %s182 = smul.addr %s27, 2
          %s183 = sadd.s32 %s178, %s182
          %s184 = smul.addr %s183, 128
          %s185 = scalar_lea.hbm %s2, %s184
          %s186 = sshll.u32 %s174, 4
          %s187 = int_to_ptr.vmem [resolvable:$true] %s186
          %192 = dma.vmem_to_hbm [thread:$0]  %s187, 256, %s185, %s171, 128, 128, 8
        $region32: #{tpu_custom_call.1} parent=23 // pred_fallthru
          _
      $region24: #{tpu_custom_call.1} parent=5 // pred_fallthru
        _
      %p193 = scmp.le.s32.totalorder 2, %s18
      // Predicated region
      $region33: #{tpu_custom_call.1} parent=5 // pred_check
        %p194 = pneg %p193
      $region34: #{tpu_custom_call.1} parent=5 // pred_check_branch
        %196 = sbr.rel (%p194) target = $region36
      $region35: #{tpu_custom_call.1} parent=5 // pred_region
        %s197 = ssub.s32 %s18, 2
        // Predicated region
        $region37: #{tpu_custom_call.1} parent=35 // pred_check
          %p198 = pneg %p89
        $region38: #{tpu_custom_call.1} parent=35 // pred_check_branch
          %200 = sbr.rel (%p198) target = $region40
        $region39: #{tpu_custom_call.1} parent=35 // pred_region
          %s201 = sand.u32 %s74, 1
          %s202 = scalar_lea.sflag [#allocation6], %s201
          %s203 = sand.u32 %s74, 1
          %s204 = smul.addr %s203, 16
          %s205 = scalar_lea.vmem [#allocation7], %s204
          %206 = dma.done %s202, 256
        $region40: #{tpu_custom_call.1} parent=35 // pred_fallthru
          _
      $region36: #{tpu_custom_call.1} parent=5 // pred_fallthru
        _
    $region6: #{tpu_custom_call.1} parent=1 // loop_footer
      %s22 = sadd.s32 1, %s18
    $region7: #{tpu_custom_call.1} parent=1 // loop_footer_branch
      %17 = sbr.rel target = $region3
    $region8: #{tpu_custom_call.1} parent=1 // loop_exit
      _
    %207 = vsyncpa [#allocation5], 1
    %s208 = scalar_lea.sflag [#allocation5], 1
    %209 = vsyncpa %s208, 1
    %210 = vsyncpa [#allocation6], 1
    %s211 = scalar_lea.sflag [#allocation6], 1
    %212 = vsyncpa %s211, 1

</llo_original>
